<compile_context>
chip_gen: v7x
topology: tpu7x:2x2x1
jax: 0.10.0
libtpu: 0.0.40
codegen_flags: <defaults>
</compile_context>

<pallas_src>
import functools

import jax
import jax.numpy as jnp
from jax.experimental import pallas as pl
from jax.experimental.pallas import tpu as pltpu

n_fac = 42
n_hidden = 256

# Above this padded-vocab size the in-kernel one-hot MXU gather is replaced by
# an XLA pre-gather of the folded table rows.
_ONEHOT_VOCAB_LIMIT = 2048


def _round_up(x, m):
    return (x + m - 1) // m * m


def _choose_batch_tiling(B):
    """Pick (TB, b_pad).

    * Multiples of 16 (bf16 vregs pack 16 rows) so small batches don't force
      half-tile / relayout work.
    * For B > 256 split into >= 2 grid steps so ("parallel",) shards the grid
      across both TensorCores on v7x; tiles capped at 512 rows (multiple of
      128, matches 128x128 MXU tiles) to amortize the ~0.35us/step overhead
      and the MXU fill/drain on the serial dependency chain without blowing
      vreg/VMEM pressure on v5e.
    """
    b16 = _round_up(B, 16)
    if b16 <= 256:
        return b16, b16                      # one tile; overhead-bound regime
    tb = min(512, _round_up(-(-b16 // 2), 128))
    return tb, _round_up(b16, tb)


def _act_dtype():
    """bf16 transcendentals only where the EUP supports bf16 (v6e / v7x)."""
    try:
        kind = jax.devices()[0].device_kind.lower()
    except Exception:  # pragma: no cover - defensive
        kind = ""
    return jnp.bfloat16 if any(t in kind for t in ("v6", "v7", "tpu7")) \
        else jnp.float32


def _rnn_tail(xw, w_h_ref, w_out_ref, b_out_ref, out_ref, act_dtype):
    """Serial 3-step recurrence + output projection + log_softmax.

    xw: [3*TB, H] f32, t-major per tile:
        xw_t = relu(E[c_t] @ W_in + b_in) @ W_h + b_h   (h0 == 0 folded away).
    """
    TB = out_ref.shape[0]
    xw1, xw2, xw3 = xw[:TB], xw[TB:2 * TB], xw[2 * TB:]
    w_h = w_h_ref[...]                                       # [H, H] bf16

    # tanh on the EUP; bf16 inputs on v6e/v7x, f32 on v5e.  Accumulations stay
    # in f32, operands feeding the MXU are bf16.
    h = jnp.tanh(xw1.astype(act_dtype)).astype(jnp.bfloat16)
    h = jnp.dot(h, w_h, preferred_element_type=jnp.float32) + xw2
    h = jnp.tanh(h.astype(act_dtype)).astype(jnp.bfloat16)
    h = jnp.dot(h, w_h, preferred_element_type=jnp.float32) + xw3
    h = jnp.tanh(h.astype(act_dtype)).astype(jnp.bfloat16)

    logits = (jnp.dot(h, w_out_ref[...], preferred_element_type=jnp.float32)
              + b_out_ref[...])                              # [TB, V_pad] f32

    # log_softmax over the (padded) vocab axis; reduction math in f32.
    # Padded lanes carry a -1e30 bias -> exp underflows to exactly 0.
    m = jnp.max(logits, axis=-1, keepdims=True)
    shifted = logits - m
    lse = jnp.log(jnp.sum(jnp.exp(shifted), axis=-1, keepdims=True))
    out_ref[...] = (shifted - lse).astype(out_ref.dtype)


def char3_onehot_kernel(ids_ref, eh_ref, w_h_ref, w_out_ref, b_out_ref,
                        out_ref, *, act_dtype):
    """Small-vocab path: one-hot MXU gather of the folded table rows."""
    tb3 = ids_ref.shape[0]                                   # 3 * TB (t-major)
    v_pad = eh_ref.shape[0]
    lane = jax.lax.broadcasted_iota(jnp.int32, (tb3, v_pad), 1)
    # Single compare against the [3*TB, 1] id column -> no concat, no slices.
    onehot = (ids_ref[...] == lane).astype(jnp.bfloat16)     # [3*TB, V_pad]
    xw = jnp.dot(onehot, eh_ref[...],
                 preferred_element_type=jnp.float32)         # [3*TB, H] f32
    _rnn_tail(xw, w_h_ref, w_out_ref, b_out_ref, out_ref, act_dtype)


def char3_pregather_kernel(xw_ref, w_h_ref, w_out_ref, b_out_ref, out_ref,
                           *, act_dtype):
    """Large-vocab path: folded rows were gathered outside the kernel."""
    xw = xw_ref[...].astype(jnp.float32)                     # [3*TB, H]
    _rnn_tail(xw, w_h_ref, w_out_ref, b_out_ref, out_ref, act_dtype)


def pack_params(params):
    """One-time (cacheable across forward calls) fold of the parameters."""
    E, w_in, b_in = params["emb"], params["w_in"], params["b_in"]
    w_h, b_h = params["w_h"], params["b_h"]
    w_out, b_out = params["w_out"], params["b_out"]

    vocab = E.shape[0]
    v_pad = _round_up(vocab, 128)

    # E_h[c] = relu(E[c] @ W_in + b_in) @ W_h + b_h   (f32 precompute).
    e_h = jax.nn.relu(E @ w_in + b_in) @ w_h + b_h           # [vocab, H]
    e_h = jnp.pad(e_h, ((0, v_pad - vocab), (0, 0))).astype(jnp.bfloat16)

    w_out_p = jnp.pad(w_out, ((0, 0), (0, v_pad - vocab))).astype(jnp.bfloat16)
    # Padded logit columns get a huge negative f32 bias so they vanish in the
    # softmax (never cast this bias below f32).
    b_out_p = jnp.pad(b_out.astype(jnp.float32),
                      ((0, 0), (0, v_pad - vocab)), constant_values=-1e30)

    return {
        "e_h": e_h,                          # [V_pad, H] bf16
        "w_h": w_h.astype(jnp.bfloat16),     # [H, H]     bf16
        "w_out": w_out_p,                    # [H, V_pad] bf16
        "b_out": b_out_p,                    # [1, V_pad] f32
        "vocab": vocab,
    }


def char3_forward(c1, c2, c3, packed, *, out_dtype=jnp.float32,
                  force_pregather=False):
    e_h, w_h = packed["e_h"], packed["w_h"]
    w_out, b_out = packed["w_out"], packed["b_out"]
    vocab = packed["vocab"]
    v_pad, H = e_h.shape

    B = c1.shape[0]
    TB, b_pad = _choose_batch_tiling(B)
    n_tiles = b_pad // TB

    # Token ids, t-major per batch tile: row (i*3 + t)*TB + r holds the t-th
    # character of sample i*TB + r.  This lets the kernel build the whole
    # one-hot with one iota compare (or slice the pre-gathered rows directly).
    ids = jnp.stack([c1, c2, c3], axis=0).astype(jnp.int32)  # [3, B]
    ids = jnp.pad(ids, ((0, 0), (0, b_pad - B)))             # padded rows -> 0
    ids_tmaj = ids.reshape(3, n_tiles, TB).transpose(1, 0, 2).reshape(3 * b_pad)

    act_dtype = _act_dtype()
    use_onehot = (v_pad <= _ONEHOT_VOCAB_LIMIT) and not force_pregather

    if use_onehot:
        kernel = functools.partial(char3_onehot_kernel, act_dtype=act_dtype)
        lead_args = (ids_tmaj.reshape(3 * b_pad, 1), e_h)
        lead_specs = [
            pl.BlockSpec((3 * TB, 1), lambda i: (i, 0)),     # id column
            pl.BlockSpec((v_pad, H), lambda i: (0, 0)),      # folded table
        ]
    else:
        # Large vocab: the one-hot matmul would waste 2*3*V*H FLOP/sample and
        # a [3*TB, V] bf16 intermediate, so gather the folded rows with XLA.
        kernel = functools.partial(char3_pregather_kernel, act_dtype=act_dtype)
        xw_g = jnp.take(e_h, ids_tmaj, axis=0)               # [3*b_pad, H] bf16
        lead_args = (xw_g,)
        lead_specs = [pl.BlockSpec((3 * TB, H), lambda i: (i, 0))]

    # NOTE: constant-index weight blocks are still double-buffered by default;
    # at V_pad=128 that is ~260 KB total and not worth special-casing.
    # TODO(synk): for very large vocab (V_pad >~ 16K) add a vocab grid axis
    # with an online max/LSE so w_out / the output block are not fully
    # VMEM-resident (and single-buffer the constant weight blocks).
    weight_specs = [
        pl.BlockSpec((H, H), lambda i: (0, 0)),              # W_h
        pl.BlockSpec((H, v_pad), lambda i: (0, 0)),          # W_out
        pl.BlockSpec((1, v_pad), lambda i: (0, 0)),          # b_out
    ]

    out = pl.pallas_call(
        kernel,
        out_shape=jax.ShapeDtypeStruct((b_pad, v_pad), out_dtype),
        grid=(n_tiles,),
        in_specs=lead_specs + weight_specs,
        out_specs=pl.BlockSpec((TB, v_pad), lambda i: (i, 0)),
        compiler_params=pltpu.CompilerParams(
            dimension_semantics=("parallel",),               # both TCs on v7x
            # Explicit scoped-VMEM budget for the large-tile regime (TB=512);
            # 48 MiB fits under v7x's 64 MiB physical and v5e/v6e's 128 MiB.
            vmem_limit_bytes=48 * 1024 * 1024),
    )(*lead_args, w_h, w_out, b_out)

    # Slice off padded batch rows and padded vocab lanes before returning.
    return out[:B, :vocab]


def init_params(key, vocab_size):
    """Deterministic synthetic parameters (shapes match the PyTorch module)."""
    ks = jax.random.split(key, 7)

    def lin(kw, fan_in, shape):
        bound = 1.0 / jnp.sqrt(fan_in)
        return jax.random.uniform(kw, shape, jnp.float32, -bound, bound)

    return {
        "emb":   jax.random.normal(ks[0], (vocab_size, n_fac), jnp.float32),
        "w_in":  lin(ks[1], n_fac, (n_fac, n_hidden)),
        "b_in":  lin(ks[2], n_fac, (1, n_hidden)),
        "w_h":   lin(ks[3], n_hidden, (n_hidden, n_hidden)),
        "b_h":   lin(ks[4], n_hidden, (1, n_hidden)),
        "w_out": lin(ks[5], n_hidden, (n_hidden, vocab_size)),
        "b_out": lin(ks[6], n_hidden, (1, vocab_size)),
    }


def reference_forward(c1, c2, c3, params):
    """Pure-JAX f32 reference matching the PyTorch module semantics."""
    E, w_in, b_in = params["emb"], params["w_in"], params["b_in"]
    w_h, b_h, w_out, b_out = (params["w_h"], params["b_h"],
                              params["w_out"], params["b_out"])

    def lin_relu(x):
        return jax.nn.relu(x @ w_in + b_in)

    in1, in2, in3 = lin_relu(E[c1]), lin_relu(E[c2]), lin_relu(E[c3])
    h = jnp.zeros_like(in1)
    for x in (in1, in2, in3):
        h = jnp.tanh((h + x) @ w_h + b_h)
    return jax.nn.log_softmax(h @ w_out + b_out, axis=-1)


if __name__ == "__main__":
    vocab_size = 128
    B = 8

    key = jax.random.PRNGKey(0)
    kp, k1, k2, k3 = jax.random.split(key, 4)
    params = init_params(kp, vocab_size)
    packed = pack_params(params)

    c1 = jax.random.randint(k1, (B,), 0, vocab_size, dtype=jnp.int32)
    c2 = jax.random.randint(k2, (B,), 0, vocab_size, dtype=jnp.int32)
    c3 = jax.random.randint(k3, (B,), 0, vocab_size, dtype=jnp.int32)

    ref = reference_forward(c1, c2, c3, params)

    # Default (one-hot MXU gather) path.
    out = char3_forward(c1, c2, c3, packed)
    jax.block_until_ready(out)
    assert out.shape == (B, vocab_size)
    # bf16 matmul operands / bf16 tanh on v6e/v7x => loosened tolerance.
    assert jnp.allclose(out, ref, atol=4e-2, rtol=4e-2)

    # Exercise the large-vocab fallback (XLA pre-gather of folded rows).
    out_g = char3_forward(c1, c2, c3, packed, force_pregather=True)
    jax.block_until_ready(out_g)
    assert out_g.shape == (B, vocab_size)
    assert jnp.allclose(out_g, ref, atol=4e-2, rtol=4e-2)

    print("KERNEL_OK")
</pallas_src>

<mosaic_0001>
module attributes {stable_mosaic.version = 11 : i64} {
  func.func @char3_onehot_kernel(%arg0: i32, %arg1: memref<48x1xi32, #tpu.memory_space<vmem>>, %arg2: memref<128x256xbf16, #tpu.memory_space<vmem>>, %arg3: memref<256x256xbf16, #tpu.memory_space<vmem>>, %arg4: memref<256x128xbf16, #tpu.memory_space<vmem>>, %arg5: memref<1x128xf32, #tpu.memory_space<vmem>>, %arg6: memref<16x128xf32, #tpu.memory_space<vmem>>) attributes {dimension_semantics = [#tpu.dimension_semantics<parallel>], iteration_bounds = array<i64: 1>, scalar_prefetch = 0 : i64, scratch_operands = 0 : i64, tpu.core_type = #tpu.core_type<tc>, window_params = [{transform_indices = @transform_0, window_bounds = array<i64: 48, 1>}, {pipeline_mode = #tpu.pipeline_mode<synchronous>, transform_indices = @transform_1, window_bounds = array<i64: 128, 256>}, {pipeline_mode = #tpu.pipeline_mode<synchronous>, transform_indices = @transform_2, window_bounds = array<i64: 256, 256>}, {pipeline_mode = #tpu.pipeline_mode<synchronous>, transform_indices = @transform_3, window_bounds = array<i64: 256, 128>}, {pipeline_mode = #tpu.pipeline_mode<synchronous>, transform_indices = @transform_4, window_bounds = array<i64: 1, 128>}, {transform_indices = @transform_5, window_bounds = array<i64: 16, 128>}]} {
    %0 = tpu.iota {dimensions = array<i32: 1>} : vector<48x128xi32>
    %c0 = arith.constant 0 : index
    %c0_0 = arith.constant 0 : index
    %1 = vector.load %arg1[%c0, %c0_0] : memref<48x1xi32, #tpu.memory_space<vmem>>, vector<48x1xi32>
    %2 = vector.broadcast %1 : vector<48x1xi32> to vector<48x128xi32>
    %3 = arith.cmpi eq, %2, %0 : vector<48x128xi32>
    %4 = arith.extui %3 : vector<48x128xi1> to vector<48x128xi32>
    %5 = arith.sitofp %4 : vector<48x128xi32> to vector<48x128xf32>
    %6 = arith.truncf %5 : vector<48x128xf32> to vector<48x128xbf16>
    %c0_1 = arith.constant 0 : index
    %c0_2 = arith.constant 0 : index
    %7 = vector.load %arg2[%c0_1, %c0_2] : memref<128x256xbf16, #tpu.memory_space<vmem>>, vector<128x256xbf16>
    %cst = arith.constant dense<0.000000e+00> : vector<48x256xf32>
    %8 = tpu.matmul %6, %7, %cst {dimension_numbers = #tpu.dot_dimension_numbers<[1], [0], [0], [1], [0, 0, 1, 1], [], []>} : vector<48x128xbf16>, vector<128x256xbf16>, vector<48x256xf32> -> vector<48x256xf32>
    %9 = vector.extract_strided_slice %8 {offsets = [0, 0], sizes = [16, 256], strides = [1, 1]} : vector<48x256xf32> to vector<16x256xf32>
    %10 = vector.extract_strided_slice %8 {offsets = [16, 0], sizes = [16, 256], strides = [1, 1]} : vector<48x256xf32> to vector<16x256xf32>
    %11 = vector.extract_strided_slice %8 {offsets = [32, 0], sizes = [16, 256], strides = [1, 1]} : vector<48x256xf32> to vector<16x256xf32>
    %c0_3 = arith.constant 0 : index
    %c0_4 = arith.constant 0 : index
    %12 = vector.load %arg3[%c0_3, %c0_4] : memref<256x256xbf16, #tpu.memory_space<vmem>>, vector<256x256xbf16>
    %13 = math.tanh %9 : vector<16x256xf32>
    %14 = arith.truncf %13 : vector<16x256xf32> to vector<16x256xbf16>
    %cst_5 = arith.constant dense<0.000000e+00> : vector<16x256xf32>
    %15 = tpu.matmul %14, %12, %cst_5 {dimension_numbers = #tpu.dot_dimension_numbers<[1], [0], [0], [1], [0, 0, 1, 1], [], []>} : vector<16x256xbf16>, vector<256x256xbf16>, vector<16x256xf32> -> vector<16x256xf32>
    %16 = arith.addf %15, %10 : vector<16x256xf32>
    %17 = math.tanh %16 : vector<16x256xf32>
    %18 = arith.truncf %17 : vector<16x256xf32> to vector<16x256xbf16>
    %cst_6 = arith.constant dense<0.000000e+00> : vector<16x256xf32>
    %19 = tpu.matmul %18, %12, %cst_6 {dimension_numbers = #tpu.dot_dimension_numbers<[1], [0], [0], [1], [0, 0, 1, 1], [], []>} : vector<16x256xbf16>, vector<256x256xbf16>, vector<16x256xf32> -> vector<16x256xf32>
    %20 = arith.addf %19, %11 : vector<16x256xf32>
    %21 = math.tanh %20 : vector<16x256xf32>
    %22 = arith.truncf %21 : vector<16x256xf32> to vector<16x256xbf16>
    %c0_7 = arith.constant 0 : index
    %c0_8 = arith.constant 0 : index
    %23 = vector.load %arg4[%c0_7, %c0_8] : memref<256x128xbf16, #tpu.memory_space<vmem>>, vector<256x128xbf16>
    %cst_9 = arith.constant dense<0.000000e+00> : vector<16x128xf32>
    %24 = tpu.matmul %22, %23, %cst_9 {dimension_numbers = #tpu.dot_dimension_numbers<[1], [0], [0], [1], [0, 0, 1, 1], [], []>} : vector<16x256xbf16>, vector<256x128xbf16>, vector<16x128xf32> -> vector<16x128xf32>
    %c0_10 = arith.constant 0 : index
    %c0_11 = arith.constant 0 : index
    %25 = vector.load %arg5[%c0_10, %c0_11] : memref<1x128xf32, #tpu.memory_space<vmem>>, vector<1x128xf32>
    %26 = vector.broadcast %25 : vector<1x128xf32> to vector<16x128xf32>
    %27 = arith.addf %24, %26 : vector<16x128xf32>
    %cst_12 = arith.constant dense<0xFF800000> : vector<16xf32>
    %28 = vector.multi_reduction <maximumf>, %27, %cst_12 [1] : vector<16x128xf32> to vector<16xf32>
    %29 = vector.shape_cast %28 : vector<16xf32> to vector<16x1xf32>
    %30 = vector.broadcast %29 : vector<16x1xf32> to vector<16x128xf32>
    %31 = arith.subf %27, %30 : vector<16x128xf32>
    %32 = math.exp %31 : vector<16x128xf32>
    %cst_13 = arith.constant dense<0.000000e+00> : vector<16xf32>
    %33 = vector.multi_reduction <add>, %32, %cst_13 [1] : vector<16x128xf32> to vector<16xf32>
    %34 = vector.shape_cast %33 : vector<16xf32> to vector<16x1xf32>
    %35 = math.log %34 : vector<16x1xf32>
    %36 = vector.broadcast %35 : vector<16x1xf32> to vector<16x128xf32>
    %37 = arith.subf %31, %36 : vector<16x128xf32>
    %c0_14 = arith.constant 0 : index
    %c0_15 = arith.constant 0 : index
    %38 = vector.load %arg6[%c0_14, %c0_15] : memref<16x128xf32, #tpu.memory_space<vmem>>, vector<16x128xf32>
    tpu.vector_store %arg6[%c0_14, %c0_15], %37 {strides = array<i32>} : memref<16x128xf32, #tpu.memory_space<vmem>>, vector<16x128xf32>,
    return
  }
  func.func @transform_0(%arg0: i32) -> (i32, i32) {
    %c0_i32 = arith.constant 0 : i32
    %c0_i32_0 = arith.constant 0 : i32
    return %arg0, %c0_i32 : i32, i32
  }
  func.func @transform_1(%arg0: i32) -> (i32, i32) {
    %c0_i32 = arith.constant 0 : i32
    %c0_i32_0 = arith.constant 0 : i32
    %c0_i32_1 = arith.constant 0 : i32
    return %c0_i32, %c0_i32_0 : i32, i32
  }
  func.func @transform_2(%arg0: i32) -> (i32, i32) {
    %c0_i32 = arith.constant 0 : i32
    %c0_i32_0 = arith.constant 0 : i32
    %c0_i32_1 = arith.constant 0 : i32
    return %c0_i32, %c0_i32_0 : i32, i32
  }
  func.func @transform_3(%arg0: i32) -> (i32, i32) {
    %c0_i32 = arith.constant 0 : i32
    %c0_i32_0 = arith.constant 0 : i32
    %c0_i32_1 = arith.constant 0 : i32
    return %c0_i32, %c0_i32_0 : i32, i32
  }
  func.func @transform_4(%arg0: i32) -> (i32, i32) {
    %c0_i32 = arith.constant 0 : i32
    %c0_i32_0 = arith.constant 0 : i32
    %c0_i32_1 = arith.constant 0 : i32
    return %c0_i32, %c0_i32_0 : i32, i32
  }
  func.func @transform_5(%arg0: i32) -> (i32, i32) {
    %c0_i32 = arith.constant 0 : i32
    %c0_i32_0 = arith.constant 0 : i32
    return %arg0, %c0_i32 : i32, i32
  }
}

</mosaic_0001>

<llo_original>
// kernel: tpu_custom_call.1
$region0: #{tpu_custom_call.1}
  #allocation0 [shape = 'u32[]', space=smem, size = 0x4, offset = 0x4, fixed_abs, tag = 'smem constant byte address 0x4 - core index']
  #allocation1 [shape = 'u32[144,128]{1,0:T(1,128)}', space=vmem, size = 0x12000, scoped, tag = 'internal scratch']
  %s0 = inlined_call_operand.vmem [shape: s32[48,1], index: 0, kind: input, shape index: {}]
  %s1 = inlined_call_operand.hbm [shape: bf16[128,256], index: 1, kind: input, shape index: {}]
  %s2 = inlined_call_operand.hbm [shape: bf16[256,256], index: 2, kind: input, shape index: {}]
  %s3 = inlined_call_operand.hbm [shape: bf16[256,128], index: 3, kind: input, shape index: {}]
  %s4 = inlined_call_operand.vmem [shape: f32[1,128], index: 4, kind: input, shape index: {}]
  %s5 = inlined_call_operand.hbm [shape: f32[16,128], index: 5, kind: output, shape index: {}]
  %s6 = sld [smem:[#allocation0]]
  $region42: #{tpu_custom_call.1} parent=0
    _
  %s8 = ssub.s32 1, %s6
  %s9 = scalar_select 0, %s8, %s6
  $region1: #{tpu_custom_call.1} parent=0
    #allocation2 [shape = 'u8[65536]{0}', space=vmem, size = 0x10000, scoped, tag = 'input window, operand 1, single buffered']
    #allocation3 [shape = 's32[1]{0}', space=sflag, size = 0x4, scoped, tag = 'scoped memory for tpu_custom_call.1']
    #allocation4 [shape = 's32[1]{0}', space=sflag, size = 0x4, scoped, tag = 'scoped memory for tpu_custom_call.1']
    #allocation5 [shape = 'u8[131072]{0}', space=vmem, size = 0x20000, scoped, tag = 'input window, operand 2, single buffered']
    #allocation6 [shape = 's32[1]{0}', space=sflag, size = 0x4, scoped, tag = 'scoped memory for tpu_custom_call.1']
    #allocation7 [shape = 'u8[65536]{0}', space=vmem, size = 0x10000, scoped, tag = 'input window, operand 3, single buffered']
    #allocation8 [shape = 'u8[8192]{0}', space=vmem, size = 0x2000, scoped, tag = 'output window, operand 0, single buffered']
    %10 = vsyncpa [#allocation3], 0
    %11 = vsyncpa [#allocation6], 0
    %12 = vsyncpa [#allocation4], 0
    // Predicated region
    $region2: #{tpu_custom_call.1} parent=1 // pred_check
      _
    $region3: #{tpu_custom_call.1} parent=1 // pred_check_branch
      %14 = sbr.rel (0) target = $region5
    $region4: #{tpu_custom_call.1} parent=1 // pred_region
      _
    $region5: #{tpu_custom_call.1} parent=1 // pred_fallthru
      _
    // Predicated region
    $region6: #{tpu_custom_call.1} parent=1 // pred_check
      _
    $region7: #{tpu_custom_call.1} parent=1 // pred_check_branch
      %16 = sbr.rel (0) target = $region9
    $region8: #{tpu_custom_call.1} parent=1 // pred_region
      %s18 = ssub.s32 2048, 2048
      %19 = vsyncadd [#allocation3], %s18
      %s20 = sshll.u32 [#allocation2], 4
      %s21 = int_to_ptr.vmem [resolvable:$true] %s20
      %26 = dma.hbm_to_vmem [thread:$0]  %s1, 2048, %s21, [#allocation3], 128, 128, 8
    $region9: #{tpu_custom_call.1} parent=1 // pred_fallthru
      _
    // Predicated region
    $region10: #{tpu_custom_call.1} parent=1 // pred_check
      _
    $region11: #{tpu_custom_call.1} parent=1 // pred_check_branch
      %28 = sbr.rel (0) target = $region13
    $region12: #{tpu_custom_call.1} parent=1 // pred_region
      %s30 = ssub.s32 4096, 4096
      %31 = vsyncadd [#allocation6], %s30
      %s32 = sshll.u32 [#allocation5], 4
      %s33 = int_to_ptr.vmem [resolvable:$true] %s32
      %38 = dma.hbm_to_vmem [thread:$0]  %s2, 4096, %s33, [#allocation6], 128, 128, 8
    $region13: #{tpu_custom_call.1} parent=1 // pred_fallthru
      _
    // Predicated region
    $region14: #{tpu_custom_call.1} parent=1 // pred_check
      _
    $region15: #{tpu_custom_call.1} parent=1 // pred_check_branch
      %40 = sbr.rel (0) target = $region17
    $region16: #{tpu_custom_call.1} parent=1 // pred_region
      %s42 = ssub.s32 2048, 2048
      %43 = vsyncadd [#allocation6], %s42
      %s44 = sshll.u32 [#allocation7], 4
      %s45 = int_to_ptr.vmem [resolvable:$true] %s44
      %50 = dma.hbm_to_vmem [thread:$0]  %s3, 2048, %s45, [#allocation6], 64, 64, 4
    $region17: #{tpu_custom_call.1} parent=1 // pred_fallthru
      _
    // Predicated region
    $region18: #{tpu_custom_call.1} parent=1 // pred_check
      _
    $region19: #{tpu_custom_call.1} parent=1 // pred_check_branch
      %52 = sbr.rel (0) target = $region21
    $region20: #{tpu_custom_call.1} parent=1 // pred_region
      _
    $region21: #{tpu_custom_call.1} parent=1 // pred_fallthru
      _
    // Predicated region
    $region22: #{tpu_custom_call.1} parent=1 // pred_check
      _
    $region23: #{tpu_custom_call.1} parent=1 // pred_check_branch
      %54 = sbr.rel (0) target = $region25
    $region24: #{tpu_custom_call.1} parent=1 // pred_region
      %55 = dma.done [#allocation3], 2048
    $region25: #{tpu_custom_call.1} parent=1 // pred_fallthru
      _
    // Predicated region
    $region26: #{tpu_custom_call.1} parent=1 // pred_check
      _
    $region27: #{tpu_custom_call.1} parent=1 // pred_check_branch
      %57 = sbr.rel (0) target = $region29
    $region28: #{tpu_custom_call.1} parent=1 // pred_region
      %58 = dma.done [#allocation6], 4096
    $region29: #{tpu_custom_call.1} parent=1 // pred_fallthru
      _
    // Predicated region
    $region30: #{tpu_custom_call.1} parent=1 // pred_check
      _
    $region31: #{tpu_custom_call.1} parent=1 // pred_check_branch
      %60 = sbr.rel (0) target = $region33
    $region32: #{tpu_custom_call.1} parent=1 // pred_region
      %61 = dma.done [#allocation6], 2048
    $region33: #{tpu_custom_call.1} parent=1 // pred_fallthru
      _
    %v63 = vlaneseq
    %v64 = vand.u32 %v63, 127
    %v65 = vld [vmem:[%s0] sm:$0xff]
    %v66 = vld [vmem:[%s0 + $0x8] sm:$0xff]
    %v67 = vld [vmem:[%s0 + $0x10] sm:$0xff]
    %v68 = vld [vmem:[%s0 + $0x18] sm:$0xff]
    %v69 = vld [vmem:[%s0 + $0x20] sm:$0xff]
    %v70 = vld [vmem:[%s0 + $0x28] sm:$0xff]
    %71 = vset.pattern.permute.xlu0 0
    %72 = vperm.xlu0 %71, %v65
    %v73 = vpop.permute.xlu0 %72
    %74 = vset.pattern.permute.xlu0 0
    %75 = vperm.xlu0 %74, %v66
    %v76 = vpop.permute.xlu0 %75
    %77 = vset.pattern.permute.xlu0 0
    %78 = vperm.xlu0 %77, %v67
    %v79 = vpop.permute.xlu0 %78
    %80 = vset.pattern.permute.xlu0 0
    %81 = vperm.xlu0 %80, %v68
    %v82 = vpop.permute.xlu0 %81
    %83 = vset.pattern.permute.xlu0 0
    %84 = vperm.xlu0 %83, %v69
    %v85 = vpop.permute.xlu0 %84
    %86 = vset.pattern.permute.xlu0 0
    %87 = vperm.xlu0 %86, %v70
    %v88 = vpop.permute.xlu0 %87
    %vm89 = vcmp.eq.s32.totalorder %v73, %v64
    %vm90 = vcmp.eq.s32.totalorder %v76, %v64
    %vm91 = vcmp.eq.s32.totalorder %v79, %v64
    %vm92 = vcmp.eq.s32.totalorder %v82, %v64
    %vm93 = vcmp.eq.s32.totalorder %v85, %v64
    %vm94 = vcmp.eq.s32.totalorder %v88, %v64
    %v95 = vsel %vm89, 1, 0
    %v96 = vsel %vm90, 1, 0
    %v97 = vsel %vm91, 1, 0
    %v98 = vsel %vm92, 1, 0
    %v99 = vsel %vm93, 1, 0
    %v100 = vsel %vm94, 1, 0
    %v101 = vcvt.s32.f32 %v95
    %v102 = vcvt.s32.f32 %v96
    %v103 = vcvt.s32.f32 %v97
    %v104 = vcvt.s32.f32 %v98
    %v105 = vcvt.s32.f32 %v99
    %v106 = vcvt.s32.f32 %v100
    %v107 = vpack.c.bf16 %v102, %v101
    %v108 = vpack.c.bf16 %v104, %v103
    %v109 = vpack.c.bf16 %v106, %v105
    %v110 = vld [vmem:[#allocation2] sm:$0xff]
    %v111 = vld [vmem:[#allocation2 + $0x8] sm:$0xff]
    %v112 = vld [vmem:[#allocation2 + $0x10] sm:$0xff]
    %v113 = vld [vmem:[#allocation2 + $0x18] sm:$0xff]
    %v114 = vld [vmem:[#allocation2 + $0x20] sm:$0xff]
    %v115 = vld [vmem:[#allocation2 + $0x28] sm:$0xff]
    %v116 = vld [vmem:[#allocation2 + $0x30] sm:$0xff]
    %v117 = vld [vmem:[#allocation2 + $0x38] sm:$0xff]
    %v118 = vld [vmem:[#allocation2 + $0x40] sm:$0xff]
    %v119 = vld [vmem:[#allocation2 + $0x48] sm:$0xff]
    %v120 = vld [vmem:[#allocation2 + $0x50] sm:$0xff]
    %v121 = vld [vmem:[#allocation2 + $0x58] sm:$0xff]
    %v122 = vld [vmem:[#allocation2 + $0x60] sm:$0xff]
    %v123 = vld [vmem:[#allocation2 + $0x68] sm:$0xff]
    %v124 = vld [vmem:[#allocation2 + $0x70] sm:$0xff]
    %v125 = vld [vmem:[#allocation2 + $0x78] sm:$0xff]
    %v142 = vunpack.c.l.b16 %v110
    %v143 = vunpack.c.h.b16 %v110
    %v144 = vunpack.c.l.b16 %v111
    %v145 = vunpack.c.h.b16 %v111
    %v146 = vunpack.c.l.b16 %v112
    %v147 = vunpack.c.h.b16 %v112
    %v148 = vunpack.c.l.b16 %v113
    %v149 = vunpack.c.h.b16 %v113
    %v150 = vunpack.c.l.b16 %v114
    %v151 = vunpack.c.h.b16 %v114
    %v152 = vunpack.c.l.b16 %v115
    %v153 = vunpack.c.h.b16 %v115
    %v154 = vunpack.c.l.b16 %v116
    %v155 = vunpack.c.h.b16 %v116
    %v156 = vunpack.c.l.b16 %v117
    %v157 = vunpack.c.h.b16 %v117
    %v158 = vunpack.c.l.b16 %v118
    %v159 = vunpack.c.h.b16 %v118
    %v160 = vunpack.c.l.b16 %v119
    %v161 = vunpack.c.h.b16 %v119
    %v162 = vunpack.c.l.b16 %v120
    %v163 = vunpack.c.h.b16 %v120
    %v164 = vunpack.c.l.b16 %v121
    %v165 = vunpack.c.h.b16 %v121
    %v166 = vunpack.c.l.b16 %v122
    %v167 = vunpack.c.h.b16 %v122
    %v168 = vunpack.c.l.b16 %v123
    %v169 = vunpack.c.h.b16 %v123
    %v170 = vunpack.c.l.b16 %v124
    %v171 = vunpack.c.h.b16 %v124
    %v172 = vunpack.c.l.b16 %v125
    %v173 = vunpack.c.h.b16 %v125
    %v174 = vpack.c.b16 %v144, %v142
    %v175 = vpack.c.b16 %v145, %v143
    %v176 = vpack.c.b16 %v148, %v146
    %v177 = vpack.c.b16 %v149, %v147
    %v178 = vpack.c.b16 %v152, %v150
    %v179 = vpack.c.b16 %v153, %v151
    %v180 = vpack.c.b16 %v156, %v154
    %v181 = vpack.c.b16 %v157, %v155
    %v182 = vpack.c.b16 %v160, %v158
    %v183 = vpack.c.b16 %v161, %v159
    %v184 = vpack.c.b16 %v164, %v162
    %v185 = vpack.c.b16 %v165, %v163
    %v186 = vpack.c.b16 %v168, %v166
    %v187 = vpack.c.b16 %v169, %v167
    %v188 = vpack.c.b16 %v172, %v170
    %v189 = vpack.c.b16 %v173, %v171
    %206 = vmatprep.subr.bf16.mxu0 %v175
    %207 = vmatpush1.bf16.msra.mxu0 %v174
    %208 = vmatprep.subr.bf16.mxu0 %v177
    %209 = vmatpush1.bf16.msra.mxu0 %v176
    %210 = vmatprep.subr.bf16.mxu0 %v179
    %211 = vmatpush1.bf16.msra.mxu0 %v178
    %212 = vmatprep.subr.bf16.mxu0 %v181
    %213 = vmatpush1.bf16.msra.mxu0 %v180
    %214 = vmatprep.subr.bf16.mxu0 %v183
    %215 = vmatpush1.bf16.msra.mxu0 %v182
    %216 = vmatprep.subr.bf16.mxu0 %v185
    %217 = vmatpush1.bf16.msra.mxu0 %v184
    %218 = vmatprep.subr.bf16.mxu0 %v187
    %219 = vmatpush1.bf16.msra.mxu0 %v186
    %220 = vmatprep.subr.bf16.mxu0 %v189
    %221 = vmatpush1.bf16.msra.mxu0 %v188
    %222 = vmatprep.subr.bf16.mxu0 0
    %223 = vmatpush1.bf16.msra.mxu0 0
    %224 = vmatprep.subr.bf16.mxu0 0
    %225 = vmatpush1.bf16.msra.mxu0 0
    %226 = vmatprep.subr.bf16.mxu0 0
    %227 = vmatpush1.bf16.msra.mxu0 0
    %228 = vmatprep.subr.bf16.mxu0 0
    %229 = vmatpush1.bf16.msra.mxu0 0
    %230 = vmatprep.subr.bf16.mxu0 0
    %231 = vmatpush1.bf16.msra.mxu0 0
    %232 = vmatprep.subr.bf16.mxu0 0
    %233 = vmatpush1.bf16.msra.mxu0 0
    %234 = vmatprep.subr.bf16.mxu0 0
    %235 = vmatpush1.bf16.msra.mxu0 0
    %236 = vmatprep.subr.bf16.mxu0 0
    %237 = vmatpush1.bf16.msra.mxu0 0
    %238 = vmatprep.mubr.bf16.mxu0 0
    %239 = vmatmul.mubr.bf16.gmra.mrb[0].mxu0 %v107
    %v240 = vpop.f32.mrb[0].mxu0
    %v241 = vadd.f32 0.0, %v240
    %v242 = vpop.f32.mrb[0].mxu0
    %v243 = vadd.f32 0.0, %v242
    %v244 = vpop.f32.mrb[0].mxu0
    %v245 = vadd.f32 0.0, %v244
    %v246 = vpop.f32.mrb[0].mxu0
    %v247 = vadd.f32 0.0, %v246
    %248 = vmatprep.mubr.bf16.mxu0 0
    %249 = vmatmul.mubr.bf16.gmra.mrb[0].mxu0 %v108
    %v250 = vpop.f32.mrb[0].mxu0
    %v251 = vadd.f32 0.0, %v250
    %v252 = vpop.f32.mrb[0].mxu0
    %v253 = vadd.f32 0.0, %v252
    %v254 = vpop.f32.mrb[0].mxu0
    %v255 = vadd.f32 0.0, %v254
    %v256 = vpop.f32.mrb[0].mxu0
    %v257 = vadd.f32 0.0, %v256
    %258 = vmatprep.mubr.bf16.mxu0 0
    %259 = vmatmul.mubr.bf16.gmra.mrb[0].mxu0 %v109
    %v260 = vpop.f32.mrb[0].mxu0
    %v261 = vadd.f32 0.0, %v260
    %v262 = vpop.f32.mrb[0].mxu0
    %v263 = vadd.f32 0.0, %v262
    %v264 = vpop.f32.mrb[0].mxu0
    %v265 = vadd.f32 0.0, %v264
    %v266 = vpop.f32.mrb[0].mxu0
    %v267 = vadd.f32 0.0, %v266
    %268 = vdwg.mxu0
    %v269 = vld [vmem:[#allocation5] sm:$0xff]
    %v270 = vld [vmem:[#allocation5 + $0x8] sm:$0xff]
    %v271 = vld [vmem:[#allocation5 + $0x10] sm:$0xff]
    %v272 = vld [vmem:[#allocation5 + $0x18] sm:$0xff]
    %v273 = vld [vmem:[#allocation5 + $0x20] sm:$0xff]
    %v274 = vld [vmem:[#allocation5 + $0x28] sm:$0xff]
    %v275 = vld [vmem:[#allocation5 + $0x30] sm:$0xff]
    %v276 = vld [vmem:[#allocation5 + $0x38] sm:$0xff]
    %v277 = vld [vmem:[#allocation5 + $0x40] sm:$0xff]
    %v278 = vld [vmem:[#allocation5 + $0x48] sm:$0xff]
    %v279 = vld [vmem:[#allocation5 + $0x50] sm:$0xff]
    %v280 = vld [vmem:[#allocation5 + $0x58] sm:$0xff]
    %v281 = vld [vmem:[#allocation5 + $0x60] sm:$0xff]
    %v282 = vld [vmem:[#allocation5 + $0x68] sm:$0xff]
    %v283 = vld [vmem:[#allocation5 + $0x70] sm:$0xff]
    %v284 = vld [vmem:[#allocation5 + $0x78] sm:$0xff]
    %v285 = vld [vmem:[#allocation5 + $0x80] sm:$0xff]
    %v286 = vld [vmem:[#allocation5 + $0x88] sm:$0xff]
    %v287 = vld [vmem:[#allocation5 + $0x90] sm:$0xff]
    %v288 = vld [vmem:[#allocation5 + $0x98] sm:$0xff]
    %v289 = vld [vmem:[#allocation5 + $0xa0] sm:$0xff]
    %v290 = vld [vmem:[#allocation5 + $0xa8] sm:$0xff]
    %v291 = vld [vmem:[#allocation5 + $0xb0] sm:$0xff]
    %v292 = vld [vmem:[#allocation5 + $0xb8] sm:$0xff]
    %v293 = vld [vmem:[#allocation5 + $0xc0] sm:$0xff]
    %v294 = vld [vmem:[#allocation5 + $0xc8] sm:$0xff]
    %v295 = vld [vmem:[#allocation5 + $0xd0] sm:$0xff]
    %v296 = vld [vmem:[#allocation5 + $0xd8] sm:$0xff]
    %v297 = vld [vmem:[#allocation5 + $0xe0] sm:$0xff]
    %v298 = vld [vmem:[#allocation5 + $0xe8] sm:$0xff]
    %v299 = vld [vmem:[#allocation5 + $0xf0] sm:$0xff]
    %v300 = vld [vmem:[#allocation5 + $0xf8] sm:$0xff]
    %v301 = vtanh.pop %v241
    %v302 = vtanh.pop %v243
    %v303 = vtanh.pop %v245
    %v304 = vtanh.pop %v247
    %v305 = vpack.c.bf16 %v303, %v301
    %v306 = vpack.c.bf16 %v304, %v302
    %v339 = vunpack.c.l.b16 %v269
    %v340 = vunpack.c.h.b16 %v269
    %v341 = vunpack.c.l.b16 %v270
    %v342 = vunpack.c.h.b16 %v270
    %v343 = vunpack.c.l.b16 %v271
    %v344 = vunpack.c.h.b16 %v271
    %v345 = vunpack.c.l.b16 %v272
    %v346 = vunpack.c.h.b16 %v272
    %v347 = vunpack.c.l.b16 %v273
    %v348 = vunpack.c.h.b16 %v273
    %v349 = vunpack.c.l.b16 %v274
    %v350 = vunpack.c.h.b16 %v274
    %v351 = vunpack.c.l.b16 %v275
    %v352 = vunpack.c.h.b16 %v275
    %v353 = vunpack.c.l.b16 %v276
    %v354 = vunpack.c.h.b16 %v276
    %v355 = vunpack.c.l.b16 %v277
    %v356 = vunpack.c.h.b16 %v277
    %v357 = vunpack.c.l.b16 %v278
    %v358 = vunpack.c.h.b16 %v278
    %v359 = vunpack.c.l.b16 %v279
    %v360 = vunpack.c.h.b16 %v279
    %v361 = vunpack.c.l.b16 %v280
    %v362 = vunpack.c.h.b16 %v280
    %v363 = vunpack.c.l.b16 %v281
    %v364 = vunpack.c.h.b16 %v281
    %v365 = vunpack.c.l.b16 %v282
    %v366 = vunpack.c.h.b16 %v282
    %v367 = vunpack.c.l.b16 %v283
    %v368 = vunpack.c.h.b16 %v283
    %v369 = vunpack.c.l.b16 %v284
    %v370 = vunpack.c.h.b16 %v284
    %v371 = vunpack.c.l.b16 %v285
    %v372 = vunpack.c.h.b16 %v285
    %v373 = vunpack.c.l.b16 %v286
    %v374 = vunpack.c.h.b16 %v286
    %v375 = vunpack.c.l.b16 %v287
    %v376 = vunpack.c.h.b16 %v287
    %v377 = vunpack.c.l.b16 %v288
    %v378 = vunpack.c.h.b16 %v288
    %v379 = vunpack.c.l.b16 %v289
    %v380 = vunpack.c.h.b16 %v289
    %v381 = vunpack.c.l.b16 %v290
    %v382 = vunpack.c.h.b16 %v290
    %v383 = vunpack.c.l.b16 %v291
    %v384 = vunpack.c.h.b16 %v291
    %v385 = vunpack.c.l.b16 %v292
    %v386 = vunpack.c.h.b16 %v292
    %v387 = vunpack.c.l.b16 %v293
    %v388 = vunpack.c.h.b16 %v293
    %v389 = vunpack.c.l.b16 %v294
    %v390 = vunpack.c.h.b16 %v294
    %v391 = vunpack.c.l.b16 %v295
    %v392 = vunpack.c.h.b16 %v295
    %v393 = vunpack.c.l.b16 %v296
    %v394 = vunpack.c.h.b16 %v296
    %v395 = vunpack.c.l.b16 %v297
    %v396 = vunpack.c.h.b16 %v297
    %v397 = vunpack.c.l.b16 %v298
    %v398 = vunpack.c.h.b16 %v298
    %v399 = vunpack.c.l.b16 %v299
    %v400 = vunpack.c.h.b16 %v299
    %v401 = vunpack.c.l.b16 %v300
    %v402 = vunpack.c.h.b16 %v300
    %v403 = vpack.c.b16 %v341, %v339
    %v404 = vpack.c.b16 %v342, %v340
    %v405 = vpack.c.b16 %v345, %v343
    %v406 = vpack.c.b16 %v346, %v344
    %v407 = vpack.c.b16 %v349, %v347
    %v408 = vpack.c.b16 %v350, %v348
    %v409 = vpack.c.b16 %v353, %v351
    %v410 = vpack.c.b16 %v354, %v352
    %v411 = vpack.c.b16 %v357, %v355
    %v412 = vpack.c.b16 %v358, %v356
    %v413 = vpack.c.b16 %v361, %v359
    %v414 = vpack.c.b16 %v362, %v360
    %v415 = vpack.c.b16 %v365, %v363
    %v416 = vpack.c.b16 %v366, %v364
    %v417 = vpack.c.b16 %v369, %v367
    %v418 = vpack.c.b16 %v370, %v368
    %v419 = vpack.c.b16 %v373, %v371
    %v420 = vpack.c.b16 %v374, %v372
    %v421 = vpack.c.b16 %v377, %v375
    %v422 = vpack.c.b16 %v378, %v376
    %v423 = vpack.c.b16 %v381, %v379
    %v424 = vpack.c.b16 %v382, %v380
    %v425 = vpack.c.b16 %v385, %v383
    %v426 = vpack.c.b16 %v386, %v384
    %v427 = vpack.c.b16 %v389, %v387
    %v428 = vpack.c.b16 %v390, %v388
    %v429 = vpack.c.b16 %v393, %v391
    %v430 = vpack.c.b16 %v394, %v392
    %v431 = vpack.c.b16 %v397, %v395
    %v432 = vpack.c.b16 %v398, %v396
    %v433 = vpack.c.b16 %v401, %v399
    %v434 = vpack.c.b16 %v402, %v400
    %467 = vmatprep.subr.bf16.mxu0 %v404
    %468 = vmatpush1.bf16.msra.mxu0 %v403
    %469 = vmatprep.subr.bf16.mxu0 %v406
    %470 = vmatpush1.bf16.msra.mxu0 %v405
    %471 = vmatprep.subr.bf16.mxu0 %v408
    %472 = vmatpush1.bf16.msra.mxu0 %v407
    %473 = vmatprep.subr.bf16.mxu0 %v410
    %474 = vmatpush1.bf16.msra.mxu0 %v409
    %475 = vmatprep.subr.bf16.mxu0 %v412
    %476 = vmatpush1.bf16.msra.mxu0 %v411
    %477 = vmatprep.subr.bf16.mxu0 %v414
    %478 = vmatpush1.bf16.msra.mxu0 %v413
    %479 = vmatprep.subr.bf16.mxu0 %v416
    %480 = vmatpush1.bf16.msra.mxu0 %v415
    %481 = vmatprep.subr.bf16.mxu0 %v418
    %482 = vmatpush1.bf16.msra.mxu0 %v417
    %483 = vmatprep.subr.bf16.mxu0 %v420
    %484 = vmatpush1.bf16.msra.mxu0 %v419
    %485 = vmatprep.subr.bf16.mxu0 %v422
    %486 = vmatpush1.bf16.msra.mxu0 %v421
    %487 = vmatprep.subr.bf16.mxu0 %v424
    %488 = vmatpush1.bf16.msra.mxu0 %v423
    %489 = vmatprep.subr.bf16.mxu0 %v426
    %490 = vmatpush1.bf16.msra.mxu0 %v425
    %491 = vmatprep.subr.bf16.mxu0 %v428
    %492 = vmatpush1.bf16.msra.mxu0 %v427
    %493 = vmatprep.subr.bf16.mxu0 %v430
    %494 = vmatpush1.bf16.msra.mxu0 %v429
    %495 = vmatprep.subr.bf16.mxu0 %v432
    %496 = vmatpush1.bf16.msra.mxu0 %v431
    %497 = vmatprep.subr.bf16.mxu0 %v434
    %498 = vmatpush1.bf16.msra.mxu0 %v433
    %499 = vmatprep.mubr.bf16.mxu0 %v306
    %500 = vmatmul.mubr.bf16.gmra.mrb[0].mxu0 %v305
    %v501 = vpop.f32.mrb[0].mxu0
    %v502 = vadd.f32 %v251, %v501
    %v503 = vpop.f32.mrb[0].mxu0
    %v504 = vadd.f32 %v253, %v503
    %v505 = vpop.f32.mrb[0].mxu0
    %v506 = vadd.f32 %v255, %v505
    %v507 = vpop.f32.mrb[0].mxu0
    %v508 = vadd.f32 %v257, %v507
    %509 = vdwg.mxu0
    %v510 = vtanh.pop %v502
    %v511 = vtanh.pop %v504
    %v512 = vtanh.pop %v506
    %v513 = vtanh.pop %v508
    %v514 = vpack.c.bf16 %v512, %v510
    %v515 = vpack.c.bf16 %v513, %v511
    %516 = vmatprep.subr.bf16.mxu0 %v404
    %517 = vmatpush1.bf16.msra.mxu0 %v403
    %518 = vmatprep.subr.bf16.mxu0 %v406
    %519 = vmatpush1.bf16.msra.mxu0 %v405
    %520 = vmatprep.subr.bf16.mxu0 %v408
    %521 = vmatpush1.bf16.msra.mxu0 %v407
    %522 = vmatprep.subr.bf16.mxu0 %v410
    %523 = vmatpush1.bf16.msra.mxu0 %v409
    %524 = vmatprep.subr.bf16.mxu0 %v412
    %525 = vmatpush1.bf16.msra.mxu0 %v411
    %526 = vmatprep.subr.bf16.mxu0 %v414
    %527 = vmatpush1.bf16.msra.mxu0 %v413
    %528 = vmatprep.subr.bf16.mxu0 %v416
    %529 = vmatpush1.bf16.msra.mxu0 %v415
    %530 = vmatprep.subr.bf16.mxu0 %v418
    %531 = vmatpush1.bf16.msra.mxu0 %v417
    %532 = vmatprep.subr.bf16.mxu0 %v420
    %533 = vmatpush1.bf16.msra.mxu0 %v419
    %534 = vmatprep.subr.bf16.mxu0 %v422
    %535 = vmatpush1.bf16.msra.mxu0 %v421
    %536 = vmatprep.subr.bf16.mxu0 %v424
    %537 = vmatpush1.bf16.msra.mxu0 %v423
    %538 = vmatprep.subr.bf16.mxu0 %v426
    %539 = vmatpush1.bf16.msra.mxu0 %v425
    %540 = vmatprep.subr.bf16.mxu0 %v428
    %541 = vmatpush1.bf16.msra.mxu0 %v427
    %542 = vmatprep.subr.bf16.mxu0 %v430
    %543 = vmatpush1.bf16.msra.mxu0 %v429
    %544 = vmatprep.subr.bf16.mxu0 %v432
    %545 = vmatpush1.bf16.msra.mxu0 %v431
    %546 = vmatprep.subr.bf16.mxu0 %v434
    %547 = vmatpush1.bf16.msra.mxu0 %v433
    %548 = vmatprep.mubr.bf16.mxu0 %v515
    %549 = vmatmul.mubr.bf16.gmra.mrb[0].mxu0 %v514
    %v550 = vpop.f32.mrb[0].mxu0
    %v551 = vadd.f32 %v261, %v550
    %v552 = vpop.f32.mrb[0].mxu0
    %v553 = vadd.f32 %v263, %v552
    %v554 = vpop.f32.mrb[0].mxu0
    %v555 = vadd.f32 %v265, %v554
    %v556 = vpop.f32.mrb[0].mxu0
    %v557 = vadd.f32 %v267, %v556
    %558 = vdwg.mxu0
    %v559 = vtanh.pop %v551
    %v560 = vtanh.pop %v553
    %v561 = vtanh.pop %v555
    %v562 = vtanh.pop %v557
    %v563 = vpack.c.bf16 %v561, %v559
    %v564 = vpack.c.bf16 %v562, %v560
    %v565 = vld [vmem:[#allocation7] sm:$0xf]
    %v566 = vld [vmem:[#allocation7 + $0x4] sm:$0xf]
    %v567 = vld [vmem:[#allocation7 + $0x8] sm:$0xf]
    %v568 = vld [vmem:[#allocation7 + $0xc] sm:$0xf]
    %v569 = vld [vmem:[#allocation7 + $0x10] sm:$0xf]
    %v570 = vld [vmem:[#allocation7 + $0x14] sm:$0xf]
    %v571 = vld [vmem:[#allocation7 + $0x18] sm:$0xf]
    %v572 = vld [vmem:[#allocation7 + $0x1c] sm:$0xf]
    %v573 = vld [vmem:[#allocation7 + $0x20] sm:$0xf]
    %v574 = vld [vmem:[#allocation7 + $0x24] sm:$0xf]
    %v575 = vld [vmem:[#allocation7 + $0x28] sm:$0xf]
    %v576 = vld [vmem:[#allocation7 + $0x2c] sm:$0xf]
    %v577 = vld [vmem:[#allocation7 + $0x30] sm:$0xf]
    %v578 = vld [vmem:[#allocation7 + $0x34] sm:$0xf]
    %v579 = vld [vmem:[#allocation7 + $0x38] sm:$0xf]
    %v580 = vld [vmem:[#allocation7 + $0x3c] sm:$0xf]
    %v581 = vld [vmem:[#allocation7 + $0x40] sm:$0xf]
    %v582 = vld [vmem:[#allocation7 + $0x44] sm:$0xf]
    %v583 = vld [vmem:[#allocation7 + $0x48] sm:$0xf]
    %v584 = vld [vmem:[#allocation7 + $0x4c] sm:$0xf]
    %v585 = vld [vmem:[#allocation7 + $0x50] sm:$0xf]
    %v586 = vld [vmem:[#allocation7 + $0x54] sm:$0xf]
    %v587 = vld [vmem:[#allocation7 + $0x58] sm:$0xf]
    %v588 = vld [vmem:[#allocation7 + $0x5c] sm:$0xf]
    %v589 = vld [vmem:[#allocation7 + $0x60] sm:$0xf]
    %v590 = vld [vmem:[#allocation7 + $0x64] sm:$0xf]
    %v591 = vld [vmem:[#allocation7 + $0x68] sm:$0xf]
    %v592 = vld [vmem:[#allocation7 + $0x6c] sm:$0xf]
    %v593 = vld [vmem:[#allocation7 + $0x70] sm:$0xf]
    %v594 = vld [vmem:[#allocation7 + $0x74] sm:$0xf]
    %v595 = vld [vmem:[#allocation7 + $0x78] sm:$0xf]
    %v596 = vld [vmem:[#allocation7 + $0x7c] sm:$0xf]
    %v597 = vld [vmem:[%s4] sm:$0x1]
    %v599 = vlaneseq
    %v600 = vshrl.u32 %v599, 7
    %v601 = vsub.s32 0, %v600
    %v602 = vrot.slane %v597, %v601
    %v636 = vunpack.c.l.b16 %v565
    %v637 = vunpack.c.l.b16 %v566
    %v638 = vunpack.c.l.b16 %v567
    %v639 = vunpack.c.l.b16 %v568
    %v640 = vunpack.c.l.b16 %v569
    %v641 = vunpack.c.l.b16 %v570
    %v642 = vunpack.c.l.b16 %v571
    %v643 = vunpack.c.l.b16 %v572
    %v644 = vunpack.c.l.b16 %v573
    %v645 = vunpack.c.l.b16 %v574
    %v646 = vunpack.c.l.b16 %v575
    %v647 = vunpack.c.l.b16 %v576
    %v648 = vunpack.c.l.b16 %v577
    %v649 = vunpack.c.l.b16 %v578
    %v650 = vunpack.c.l.b16 %v579
    %v651 = vunpack.c.l.b16 %v580
    %v652 = vunpack.c.l.b16 %v581
    %v653 = vunpack.c.l.b16 %v582
    %v654 = vunpack.c.l.b16 %v583
    %v655 = vunpack.c.l.b16 %v584
    %v656 = vunpack.c.l.b16 %v585
    %v657 = vunpack.c.l.b16 %v586
    %v658 = vunpack.c.l.b16 %v587
    %v659 = vunpack.c.l.b16 %v588
    %v660 = vunpack.c.l.b16 %v589
    %v661 = vunpack.c.l.b16 %v590
    %v662 = vunpack.c.l.b16 %v591
    %v663 = vunpack.c.l.b16 %v592
    %v664 = vunpack.c.l.b16 %v593
    %v665 = vunpack.c.l.b16 %v594
    %v666 = vunpack.c.l.b16 %v595
    %v667 = vunpack.c.l.b16 %v596
    %v668 = vpack.c.b16 %v637, %v636
    %v669 = vpack.c.b16 %v639, %v638
    %v670 = vpack.c.b16 %v641, %v640
    %v671 = vpack.c.b16 %v643, %v642
    %v672 = vpack.c.b16 %v645, %v644
    %v673 = vpack.c.b16 %v647, %v646
    %v674 = vpack.c.b16 %v649, %v648
    %v675 = vpack.c.b16 %v651, %v650
    %v676 = vpack.c.b16 %v653, %v652
    %v677 = vpack.c.b16 %v655, %v654
    %v678 = vpack.c.b16 %v657, %v656
    %v679 = vpack.c.b16 %v659, %v658
    %v680 = vpack.c.b16 %v661, %v660
    %v681 = vpack.c.b16 %v663, %v662
    %v682 = vpack.c.b16 %v665, %v664
    %v683 = vpack.c.b16 %v667, %v666
    %700 = vmatprep.subr.bf16.mxu0 0
    %701 = vmatpush1.bf16.msra.mxu0 %v668
    %702 = vmatprep.subr.bf16.mxu0 0
    %703 = vmatpush1.bf16.msra.mxu0 %v669
    %704 = vmatprep.subr.bf16.mxu0 0
    %705 = vmatpush1.bf16.msra.mxu0 %v670
    %706 = vmatprep.subr.bf16.mxu0 0
    %707 = vmatpush1.bf16.msra.mxu0 %v671
    %708 = vmatprep.subr.bf16.mxu0 0
    %709 = vmatpush1.bf16.msra.mxu0 %v672
    %710 = vmatprep.subr.bf16.mxu0 0
    %711 = vmatpush1.bf16.msra.mxu0 %v673
    %712 = vmatprep.subr.bf16.mxu0 0
    %713 = vmatpush1.bf16.msra.mxu0 %v674
    %714 = vmatprep.subr.bf16.mxu0 0
    %715 = vmatpush1.bf16.msra.mxu0 %v675
    %716 = vmatprep.subr.bf16.mxu0 0
    %717 = vmatpush1.bf16.msra.mxu0 %v676
    %718 = vmatprep.subr.bf16.mxu0 0
    %719 = vmatpush1.bf16.msra.mxu0 %v677
    %720 = vmatprep.subr.bf16.mxu0 0
    %721 = vmatpush1.bf16.msra.mxu0 %v678
    %722 = vmatprep.subr.bf16.mxu0 0
    %723 = vmatpush1.bf16.msra.mxu0 %v679
    %724 = vmatprep.subr.bf16.mxu0 0
    %725 = vmatpush1.bf16.msra.mxu0 %v680
    %726 = vmatprep.subr.bf16.mxu0 0
    %727 = vmatpush1.bf16.msra.mxu0 %v681
    %728 = vmatprep.subr.bf16.mxu0 0
    %729 = vmatpush1.bf16.msra.mxu0 %v682
    %730 = vmatprep.subr.bf16.mxu0 0
    %731 = vmatpush1.bf16.msra.mxu0 %v683
    %732 = vmatprep.mubr.bf16.mxu0 %v564
    %733 = vmatmul.mubr.bf16.gmra.mrb[0].mxu0 %v563
    %v734 = vpop.f32.mrb[0].mxu0
    %v735 = vadd.f32 %v602, %v734
    %v736 = vpop.f32.mrb[0].mxu0
    %v737 = vpop.f32.mrb[0].mxu0
    %v738 = vadd.f32 %v602, %v737
    %v739 = vpop.f32.mrb[0].mxu0
    %740 = vdwg.mxu0
    %741 = vmax.xlane.f32.xlu0 %v735
    %v742 = vpop.xlane.xlu0 %741
    %743 = vmax.xlane.f32.xlu0 %v738
    %v744 = vpop.xlane.xlu0 %743
    %v745 = vsub.f32 %v735, %v742
    %v746 = vsub.f32 %v738, %v744
    %v747 = vmul.f32 %v745, 1.442695
    %v748 = vpow.pop %v747
    %v749 = vmul.f32 %v746, 1.442695
    %v750 = vpow.pop %v749
    %751 = vadd.xlane.f32.xlu0 %v748
    %v752 = vpop.xlane.xlu0 %751
    %753 = vadd.xlane.f32.xlu0 %v750
    %v754 = vpop.xlane.xlu0 %753
    %v755 = vlog2.pop %v752
    %v756 = vmul.f32 %v755, 0.6931472
    %v757 = vlog2.pop %v754
    %v758 = vmul.f32 %v757, 0.6931472
    %v759 = vsub.f32 %v745, %v756
    %v760 = vsub.f32 %v746, %v758
    %761 = vst [vmem:[#allocation8] sm:$0xff] %v759
    %762 = vst [vmem:[#allocation8 + $0x8] sm:$0xff] %v760
    // Predicated region
    $region34: #{tpu_custom_call.1} parent=1 // pred_check
      _
    $region35: #{tpu_custom_call.1} parent=1 // pred_check_branch
      %764 = sbr.rel (0) target = $region37
    $region36: #{tpu_custom_call.1} parent=1 // pred_region
      %s766 = ssub.s32 256, 256
      %767 = vsyncadd [#allocation4], %s766
      %s768 = sshll.u32 [#allocation8], 4
      %s769 = int_to_ptr.vmem [resolvable:$true] %s768
      %774 = dma.vmem_to_hbm [thread:$0]  %s769, 256, %s5, [#allocation4], 128, 128, 8
    $region37: #{tpu_custom_call.1} parent=1 // pred_fallthru
      _
    // Predicated region
    $region38: #{tpu_custom_call.1} parent=1 // pred_check
      _
    $region39: #{tpu_custom_call.1} parent=1 // pred_check_branch
      %776 = sbr.rel (0) target = $region41
    $region40: #{tpu_custom_call.1} parent=1 // pred_region
      %777 = dma.done [#allocation4], 256
    $region41: #{tpu_custom_call.1} parent=1 // pred_fallthru
      _
    %778 = vsyncpa [#allocation3], 1
    %779 = vsyncpa [#allocation6], 1
    %780 = vsyncpa [#allocation4], 1

</llo_original>
